<compile_context>
chip_gen: v6e
topology: v6e:2x2x1
jax: 0.10.0
libtpu: 0.0.40
codegen_flags: <defaults>
</compile_context>

<pallas_src>
import jax
import jax.numpy as jnp
from jax.experimental import pallas as pl
from jax.experimental.pallas import tpu as pltpu


def _round_up(x, m):
    return (x + m - 1) // m * m


def _conv_block_kernel(x_ref, w_ref, b_ref, o_ref):
    # x_ref: (TM, Kp)   im2col rows (flattened N*H*W tile)
    # w_ref: (Kp, TN)   fused 3x3 weight, lane-dense (Cout padded)
    # b_ref: (1, TN)    bias (padded)
    # o_ref: (TM, TN)
    acc = jnp.dot(x_ref[...], w_ref[...], preferred_element_type=jnp.float32)
    acc = acc + b_ref[...].astype(jnp.float32)   # broadcast (1, TN)
    o_ref[...] = jnp.maximum(acc, 0.0).astype(o_ref.dtype)   # fused ReLU


def conv_block_forward(x_nchw, weight, bias, *, tm=256, tn=128):
    """x_nchw: (N, Cin, H, W); weight: (Cout, Cin, KH, KW); bias: (Cout,)."""
    N, Cin, H, W = x_nchw.shape
    Cout, _, KH, KW = weight.shape
    pad = 1  # padding=1 for kernel_size=3, stride=1

    # ---- Wrapper-side layout glue (plain JAX) ------------------------------
    # NCHW -> NHWC, zero-pad spatial dims.
    x_nhwc = jnp.transpose(x_nchw, (0, 2, 3, 1))                 # (N, H, W, Cin)
    x_pad = jnp.pad(x_nhwc, ((0, 0), (pad, pad), (pad, pad), (0, 0)))

    # im2col: (N*H*W, KH*KW*Cin), K ordered as (kh, kw, cin) to match the
    # weight reshape below.  Cheap for small Cin; for large Cin move the tap
    # gather into the kernel to avoid the 9x HBM duplication.
    patches = [x_pad[:, kh:kh + H, kw:kw + W, :]
               for kh in range(KH) for kw in range(KW)]
    x_col = jnp.concatenate(patches, axis=-1).reshape(N * H * W, KH * KW * Cin)

    M = N * H * W
    K = KH * KW * Cin

    # Fused, lane-dense 2D weight block and padded bias.
    w2d = jnp.transpose(weight, (2, 3, 1, 0)).reshape(K, Cout)   # (K, Cout)
    cout_p = _round_up(Cout, tn)
    k_p = _round_up(K, 8)          # sublane-align the contraction dim (zeros)
    m_p = _round_up(M, tm)

    x_col = jnp.pad(x_col, ((0, m_p - M), (0, k_p - K)))
    w2d = jnp.pad(w2d, ((0, k_p - K), (0, cout_p - Cout)))
    b2d = jnp.pad(bias.reshape(1, Cout), ((0, 0), (0, cout_p - Cout)))

    grid = (m_p // tm, cout_p // tn)   # both axes independent -> "parallel"

    out = pl.pallas_call(
        _conv_block_kernel,
        out_shape=jax.ShapeDtypeStruct((m_p, cout_p), x_nchw.dtype),
        grid_spec=pltpu.PrefetchScalarGridSpec(
            num_scalar_prefetch=0,
            grid=grid,
            in_specs=[
                pl.BlockSpec((tm, k_p), lambda i, j: (i, 0)),
                pl.BlockSpec((k_p, tn), lambda i, j: (0, j)),  # VMEM-resident weight
                pl.BlockSpec((1, tn), lambda i, j: (0, j)),
            ],
            out_specs=pl.BlockSpec((tm, tn), lambda i, j: (i, j)),
        ),
        compiler_params=pltpu.CompilerParams(
            dimension_semantics=("parallel", "parallel"),
            vmem_limit_bytes=48 * 1024 * 1024,
        ),
    )(x_col, w2d, b2d)

    # Strip M/Cout padding, restore NCHW.
    out = out[:M, :Cout].reshape(N, H, W, Cout)
    return jnp.transpose(out, (0, 3, 1, 2))


def reference_forward(x_nchw, weight, bias):
    """Pure-JAX reference (lax conv) for correctness check."""
    y = jax.lax.conv_general_dilated(
        x_nchw, weight, window_strides=(1, 1), padding=((1, 1), (1, 1)),
        dimension_numbers=("NCHW", "OIHW", "NCHW"))
    y = y + bias.reshape(1, -1, 1, 1)
    return jnp.maximum(y, 0.0)


if __name__ == "__main__":
    key = jax.random.PRNGKey(0)
    k_x, k_w, k_b = jax.random.split(key, 3)

    N, Cin, Cout, H, W = 2, 4, 8, 16, 16
    KH = KW = 3

    x = jax.random.normal(k_x, (N, Cin, H, W), dtype=jnp.float32)
    # Deterministic "Kaiming-ish" init for the Conv2d params.
    fan_in = Cin * KH * KW
    weight = jax.random.normal(k_w, (Cout, Cin, KH, KW), dtype=jnp.float32) / jnp.sqrt(fan_in)
    bias = jax.random.normal(k_b, (Cout,), dtype=jnp.float32) * 0.1

    out = conv_block_forward(x, weight, bias)
    jax.block_until_ready(out)

    ref = reference_forward(x, weight, bias)
    assert out.shape == (N, Cout, H, W)
    max_err = float(jnp.max(jnp.abs(out - ref)))
    assert jnp.allclose(out, ref, atol=1e-3, rtol=1e-3), f"max abs err {max_err}"

    print("KERNEL_OK")
</pallas_src>

<mosaic_0001>
module attributes {stable_mosaic.version = 11 : i64} {
  func.func @_conv_block_kernel(%arg0: i32, %arg1: i32, %arg2: memref<256x40xf32, #tpu.memory_space<vmem>>, %arg3: memref<40x128xf32, #tpu.memory_space<vmem>>, %arg4: memref<1x128xf32, #tpu.memory_space<vmem>>, %arg5: memref<256x128xf32, #tpu.memory_space<vmem>>) attributes {dimension_semantics = [#tpu.dimension_semantics<parallel>, #tpu.dimension_semantics<parallel>], iteration_bounds = array<i64: 2, 1>, scalar_prefetch = 0 : i64, scratch_operands = 0 : i64, tpu.core_type = #tpu.core_type<tc>, window_params = [{transform_indices = @transform_0, window_bounds = array<i64: 256, 40>}, {transform_indices = @transform_1, window_bounds = array<i64: 40, 128>}, {transform_indices = @transform_2, window_bounds = array<i64: 1, 128>}, {transform_indices = @transform_3, window_bounds = array<i64: 256, 128>}]} {
    %c0 = arith.constant 0 : index
    %c0_0 = arith.constant 0 : index
    %0 = vector.load %arg2[%c0, %c0_0] : memref<256x40xf32, #tpu.memory_space<vmem>>, vector<256x40xf32>
    %c0_1 = arith.constant 0 : index
    %c0_2 = arith.constant 0 : index
    %1 = vector.load %arg3[%c0_1, %c0_2] : memref<40x128xf32, #tpu.memory_space<vmem>>, vector<40x128xf32>
    %cst = arith.constant dense<0.000000e+00> : vector<256x128xf32>
    %2 = tpu.matmul %0, %1, %cst {dimension_numbers = #tpu.dot_dimension_numbers<[1], [0], [0], [1], [0, 0, 1, 1], [], []>} : vector<256x40xf32>, vector<40x128xf32>, vector<256x128xf32> -> vector<256x128xf32>
    %c0_3 = arith.constant 0 : index
    %c0_4 = arith.constant 0 : index
    %3 = vector.load %arg4[%c0_3, %c0_4] : memref<1x128xf32, #tpu.memory_space<vmem>>, vector<1x128xf32>
    %4 = vector.broadcast %3 : vector<1x128xf32> to vector<256x128xf32>
    %5 = arith.addf %2, %4 : vector<256x128xf32>
    %cst_5 = arith.constant 0.000000e+00 : f32
    %6 = vector.broadcast %cst_5 : f32 to vector<256x128xf32>
    %7 = arith.maximumf %5, %6 : vector<256x128xf32>
    %c0_6 = arith.constant 0 : index
    %c0_7 = arith.constant 0 : index
    %8 = vector.load %arg5[%c0_6, %c0_7] : memref<256x128xf32, #tpu.memory_space<vmem>>, vector<256x128xf32>
    tpu.vector_store %arg5[%c0_6, %c0_7], %7 {strides = array<i32>} : memref<256x128xf32, #tpu.memory_space<vmem>>, vector<256x128xf32>,
    return
  }
  func.func @transform_0(%arg0: i32, %arg1: i32) -> (i32, i32) {
    %c0_i32 = arith.constant 0 : i32
    %c0_i32_0 = arith.constant 0 : i32
    return %arg0, %c0_i32 : i32, i32
  }
  func.func @transform_1(%arg0: i32, %arg1: i32) -> (i32, i32) {
    %c0_i32 = arith.constant 0 : i32
    %c0_i32_0 = arith.constant 0 : i32
    return %c0_i32, %arg1 : i32, i32
  }
  func.func @transform_2(%arg0: i32, %arg1: i32) -> (i32, i32) {
    %c0_i32 = arith.constant 0 : i32
    %c0_i32_0 = arith.constant 0 : i32
    return %c0_i32, %arg1 : i32, i32
  }
  func.func @transform_3(%arg0: i32, %arg1: i32) -> (i32, i32) {
    %c0_i32 = arith.constant 0 : i32
    return %arg0, %arg1 : i32, i32
  }
}

</mosaic_0001>

<llo_original>
// kernel: tpu_custom_call.1
$region0: #{tpu_custom_call.1}
  #allocation0 [shape = 'u32[]', space=smem, size = 0x4, offset = 0x4, fixed_abs, tag = 'smem constant byte address 0x4 - core index']
  #allocation1 [shape = 'u32[144,128]{1,0:T(1,128)}', space=vmem, size = 0x12000, scoped, tag = 'internal scratch']
  %s0 = inlined_call_operand.vmem [shape: f32[512,40], index: 0, kind: input, shape index: {}]
  %s1 = inlined_call_operand.vmem [shape: f32[40,128], index: 1, kind: input, shape index: {}]
  %s2 = inlined_call_operand.vmem [shape: f32[1,128], index: 2, kind: input, shape index: {}]
  %s3 = inlined_call_operand.hbm [shape: f32[512,128], index: 3, kind: output, shape index: {}]
  %s4 = sld [smem:[#allocation0]]
  $region45: #{tpu_custom_call.1} parent=0
    _
  %s6 = ssub.s32 1, %s4
  %s7 = scalar_select 0, %s6, %s4
  $region1: #{tpu_custom_call.1} parent=0
    #allocation2 [shape = 'u8[262144]{0}', space=vmem, size = 0x40000, scoped, tag = 'output window, operand 0']
    #allocation3 [shape = 's32[2]{0}', space=sflag, size = 0x8, scoped, tag = 'scoped memory for tpu_custom_call.1']
    %8 = vsyncpa [#allocation3], 0
    %s9 = scalar_lea.sflag [#allocation3], 1
    %10 = vsyncpa %s9, 0
    loop: start=0, step=1, limit=4
    $region2: #{tpu_custom_call.1} parent=1 // loop_pre_header
      _
    $region3: #{tpu_custom_call.1} parent=1 // loop_header
      %s12 = sphi 0, %s16
      %p13 = scmp.ge.s32.totalorder %s12, 4
      %s19 = sphi 0, %s31
      %s20 = sphi 0, %s27
      %s21 = sphi 0, %s19
      %s22 = sphi 0, %s20
      %s23 = sphi 0, %s21
      %s24 = sphi 0, %s22
      %s34 = sphi 0, %s36
      %s37 = sphi 0, %s34
      %s38 = sphi 0, %s37
      %s54 = sphi 0, %s38
      %s60 = sphi 0, %s62
      %s63 = sphi 0, %s60
      %s64 = sphi 0, %s63
      %s80 = sphi 0, %s64
      %s86 = sphi 0, %s88
      %s89 = sphi 0, %s86
      %s90 = sphi 0, %s89
      %s106 = sphi 0, %s90
      %s114 = sphi 0, %s116
      %s117 = sphi 0, %s114
      %s118 = sphi 0, %s117
      %s134 = sphi 0, %s118
    $region4: #{tpu_custom_call.1} parent=1 // loop_header_branch
      %15 = sbr.rel (%p13) target = $region8
    $region5: #{tpu_custom_call.1} parent=1 // loop_body
      %s17 = ssub.s32 %s12, 1
      %s18 = ssub.s32 %s12, 2
      %s25 = sadd.s32 1, %s20
      %p26 = scmp.ge.s32.totalorder %s25, 1
      %s27 = scalar_select %p26, 0, %s25
      %s28 = sadd.s32 1, %s19
      %s29 = scalar_select %p26, %s28, %s19
      %p30 = scmp.ge.s32.totalorder %s29, 2
      %s31 = scalar_select %p30, 0, %s29
      %s32 = ssub.s32 %s19, %s31
      %p33 = scmp.eq.s32.totalorder %s32, 0
      %s35 = sadd.s32 %s34, 1
      %s36 = scalar_select %p33, %s34, %s35
      %p39 = pneg %p33
      %p40 = scmp.eq.s32.totalorder %s12, 1
      %p41 = por %p39, %p40
      %p42 = scmp.ne.s32.totalorder %s34, %s37
      %p43 = scmp.eq.s32.totalorder %s12, 0
      %p44 = por %p42, %p43
      %p45 = scmp.ne.s32.totalorder %s34, %s37
      %p46 = scmp.eq.s32.totalorder %s17, 1
      %p47 = por %p45, %p46
      %p48 = scmp.ne.s32.totalorder %s37, %s38
      %p49 = scmp.eq.s32.totalorder %s17, 0
      %p50 = por %p48, %p49
      %p51 = scmp.ne.s32.totalorder %s37, %s38
      %p52 = scmp.eq.s32.totalorder %s18, 1
      %p53 = por %p51, %p52
      %p55 = scmp.ne.s32.totalorder %s38, %s54
      %p56 = scmp.eq.s32.totalorder %s18, 0
      %p57 = por %p55, %p56
      %s58 = ssub.s32 %s20, %s27
      %p59 = scmp.eq.s32.totalorder %s58, 0
      %s61 = sadd.s32 %s60, 1
      %s62 = scalar_select %p59, %s60, %s61
      %p65 = pneg %p59
      %p66 = scmp.eq.s32.totalorder %s12, 1
      %p67 = por %p65, %p66
      %p68 = scmp.ne.s32.totalorder %s60, %s63
      %p69 = scmp.eq.s32.totalorder %s12, 0
      %p70 = por %p68, %p69
      %p71 = scmp.ne.s32.totalorder %s60, %s63
      %p72 = scmp.eq.s32.totalorder %s17, 1
      %p73 = por %p71, %p72
      %p74 = scmp.ne.s32.totalorder %s63, %s64
      %p75 = scmp.eq.s32.totalorder %s17, 0
      %p76 = por %p74, %p75
      %p77 = scmp.ne.s32.totalorder %s63, %s64
      %p78 = scmp.eq.s32.totalorder %s18, 1
      %p79 = por %p77, %p78
      %p81 = scmp.ne.s32.totalorder %s64, %s80
      %p82 = scmp.eq.s32.totalorder %s18, 0
      %p83 = por %p81, %p82
      %s84 = ssub.s32 %s20, %s27
      %p85 = scmp.eq.s32.totalorder %s84, 0
      %s87 = sadd.s32 %s86, 1
      %s88 = scalar_select %p85, %s86, %s87
      %p91 = pneg %p85
      %p92 = scmp.eq.s32.totalorder %s12, 1
      %p93 = por %p91, %p92
      %p94 = scmp.ne.s32.totalorder %s86, %s89
      %p95 = scmp.eq.s32.totalorder %s12, 0
      %p96 = por %p94, %p95
      %p97 = scmp.ne.s32.totalorder %s86, %s89
      %p98 = scmp.eq.s32.totalorder %s17, 1
      %p99 = por %p97, %p98
      %p100 = scmp.ne.s32.totalorder %s89, %s90
      %p101 = scmp.eq.s32.totalorder %s17, 0
      %p102 = por %p100, %p101
      %p103 = scmp.ne.s32.totalorder %s89, %s90
      %p104 = scmp.eq.s32.totalorder %s18, 1
      %p105 = por %p103, %p104
      %p107 = scmp.ne.s32.totalorder %s90, %s106
      %p108 = scmp.eq.s32.totalorder %s18, 0
      %p109 = por %p107, %p108
      %s110 = ssub.s32 %s19, %s31
      %s111 = ssub.s32 %s20, %s27
      %s112 = sor.u32 %s110, %s111
      %p113 = scmp.eq.s32.totalorder %s112, 0
      %s115 = sadd.s32 %s114, 1
      %s116 = scalar_select %p113, %s114, %s115
      %p119 = pneg %p113
      %p120 = scmp.eq.s32.totalorder %s12, 1
      %p121 = por %p119, %p120
      %p122 = scmp.ne.s32.totalorder %s114, %s117
      %p123 = scmp.eq.s32.totalorder %s12, 0
      %p124 = por %p122, %p123
      %p125 = scmp.ne.s32.totalorder %s114, %s117
      %p126 = scmp.eq.s32.totalorder %s17, 1
      %p127 = por %p125, %p126
      %p128 = scmp.ne.s32.totalorder %s117, %s118
      %p129 = scmp.eq.s32.totalorder %s17, 0
      %p130 = por %p128, %p129
      %p131 = scmp.ne.s32.totalorder %s117, %s118
      %p132 = scmp.eq.s32.totalorder %s18, 1
      %p133 = por %p131, %p132
      %p135 = scmp.ne.s32.totalorder %s118, %s134
      %p136 = scmp.eq.s32.totalorder %s18, 0
      %p137 = por %p135, %p136
      %p138 = scmp.le.s32.totalorder 1, %s12
      %p139 = scmp.lt.s32.totalorder %s12, 3
      %p140 = pnand %p138, %p139
      %p141 = pneg %p140
      // Predicated region
      $region9: #{tpu_custom_call.1} parent=5 // pred_check
        _
      $region10: #{tpu_custom_call.1} parent=5 // pred_check_branch
        %143 = sbr.rel (%p140) target = $region12
      $region11: #{tpu_custom_call.1} parent=5 // pred_region
        %s144 = ssub.s32 %s12, 1
        // Predicated region
        $region13: #{tpu_custom_call.1} parent=11 // pred_check
          %p145 = pneg %p76
        $region14: #{tpu_custom_call.1} parent=11 // pred_check_branch
          %147 = sbr.rel (%p145) target = $region16
        $region15: #{tpu_custom_call.1} parent=11 // pred_region
          %p148 = scmp.lt.s32.totalorder %s22, 0
          %s149 = scalar_select %p148, %s22, 0
          %s150 = smul.addr %s149, 8
          %s151 = scalar_lea.vmem %s1, %s150
        $region16: #{tpu_custom_call.1} parent=11 // pred_fallthru
          _
        // Predicated region
        $region17: #{tpu_custom_call.1} parent=11 // pred_check
          %p152 = pneg %p102
        $region18: #{tpu_custom_call.1} parent=11 // pred_check_branch
          %154 = sbr.rel (%p152) target = $region20
        $region19: #{tpu_custom_call.1} parent=11 // pred_region
          %p155 = scmp.lt.s32.totalorder %s22, 0
          %s156 = scalar_select %p155, %s22, 0
          %s157 = scalar_lea.vmem %s2, %s156
        $region20: #{tpu_custom_call.1} parent=11 // pred_fallthru
          _
      $region12: #{tpu_custom_call.1} parent=5 // pred_fallthru
        _
      %p158 = scmp.lt.s32.totalorder %s12, 2
      // Predicated region
      $region21: #{tpu_custom_call.1} parent=5 // pred_check
        %p159 = pneg %p158
      $region22: #{tpu_custom_call.1} parent=5 // pred_check_branch
        %161 = sbr.rel (%p159) target = $region24
      $region23: #{tpu_custom_call.1} parent=5 // pred_region
        // Predicated region
        $region25: #{tpu_custom_call.1} parent=23 // pred_check
          %p162 = pneg %p44
        $region26: #{tpu_custom_call.1} parent=23 // pred_check_branch
          %164 = sbr.rel (%p162) target = $region28
        $region27: #{tpu_custom_call.1} parent=23 // pred_region
          %s165 = smul.u32 32, %s19
          %p166 = scmp.lt.s32.totalorder %s165, 63
          %s167 = scalar_select %p166, %s165, 63
          %s168 = smul.addr %s167, 8
          %s169 = scalar_lea.vmem %s0, %s168
          %s170 = smul.u32 32, %s19
        $region28: #{tpu_custom_call.1} parent=23 // pred_fallthru
          _
      $region24: #{tpu_custom_call.1} parent=5 // pred_fallthru
        _
      %p171 = scmp.le.s32.totalorder 1, %s12
      %p172 = scmp.lt.s32.totalorder %s12, 3
      %p173 = pnand %p171, %p172
      %p174 = pneg %p173
      // Predicated region
      $region29: #{tpu_custom_call.1} parent=5 // pred_check
        _
      $region30: #{tpu_custom_call.1} parent=5 // pred_check_branch
        %176 = sbr.rel (%p173) target = $region32
      $region31: #{tpu_custom_call.1} parent=5 // pred_region
        %s177 = ssub.s32 %s12, 1
        %s178 = smul.u32 32, %s21
        %p179 = scmp.lt.s32.totalorder %s178, 63
        %s180 = scalar_select %p179, %s178, 63
        %s181 = smul.addr %s180, 8
        %s182 = scalar_lea.vmem %s0, %s181
        %p183 = pneg %p50
        %p184 = pneg %p47
        %p185 = scmp.lt.s32.totalorder %s22, 0
        %s186 = scalar_select %p185, %s22, 0
        %s187 = smul.addr %s186, 8
        %s188 = scalar_lea.vmem %s1, %s187
        %p189 = pneg %p76
        %p190 = pneg %p73
        %p191 = scmp.lt.s32.totalorder %s22, 0
        %s192 = scalar_select %p191, %s22, 0
        %s193 = scalar_lea.vmem %s2, %s192
        %p194 = pneg %p102
        %p195 = pneg %p99
        %p196 = pneg %p130
        %p197 = pneg %p127
        %s198 = sand.u32 %s117, 1
        %s199 = scalar_lea.sflag [#allocation3], %s198
        %s200 = sand.u32 %s117, 1
        %s201 = smul.addr %s200, 256
        %s202 = scalar_lea.vmem [#allocation2], %s201
        %s203 = smul.u32 32, %s21
        %p204 = scmp.lt.s32.totalorder %s203, 63
        %s205 = scalar_select %p204, %s203, 63
        %s206 = smul.addr %s205, 8
        %s207 = scalar_lea.vmem %s0, %s206
        %s208 = smul.u32 32, %s21
        %p209 = scmp.lt.s32.totalorder %s22, 0
        %s210 = scalar_select %p209, %s22, 0
        %s211 = smul.addr %s210, 8
        %s212 = scalar_lea.vmem %s1, %s211
        %p213 = scmp.lt.s32.totalorder %s22, 0
        %s214 = scalar_select %p213, %s22, 0
        %s215 = scalar_lea.vmem %s2, %s214
        %s216 = smul.u32 32, %s21
        %v217 = vld [vmem:[%s207] sm:$0xff]
        %v218 = vld [vmem:[%s207 + $0x8] sm:$0xff]
        %v219 = vld [vmem:[%s207 + $0x10] sm:$0xff]
        %v220 = vld [vmem:[%s207 + $0x18] sm:$0xff]
        %v221 = vld [vmem:[%s207 + $0x20] sm:$0xff]
        %v222 = vld [vmem:[%s207 + $0x28] sm:$0xff]
        %v223 = vld [vmem:[%s207 + $0x30] sm:$0xff]
        %v224 = vld [vmem:[%s207 + $0x38] sm:$0xff]
        %v225 = vld [vmem:[%s207 + $0x40] sm:$0xff]
        %v226 = vld [vmem:[%s207 + $0x48] sm:$0xff]
        %v227 = vld [vmem:[%s207 + $0x50] sm:$0xff]
        %v228 = vld [vmem:[%s207 + $0x58] sm:$0xff]
        %v229 = vld [vmem:[%s207 + $0x60] sm:$0xff]
        %v230 = vld [vmem:[%s207 + $0x68] sm:$0xff]
        %v231 = vld [vmem:[%s207 + $0x70] sm:$0xff]
        %v232 = vld [vmem:[%s207 + $0x78] sm:$0xff]
        %v233 = vld [vmem:[%s207 + $0x80] sm:$0xff]
        %v234 = vld [vmem:[%s207 + $0x88] sm:$0xff]
        %v235 = vld [vmem:[%s207 + $0x90] sm:$0xff]
        %v236 = vld [vmem:[%s207 + $0x98] sm:$0xff]
        %v237 = vld [vmem:[%s207 + $0xa0] sm:$0xff]
        %v238 = vld [vmem:[%s207 + $0xa8] sm:$0xff]
        %v239 = vld [vmem:[%s207 + $0xb0] sm:$0xff]
        %v240 = vld [vmem:[%s207 + $0xb8] sm:$0xff]
        %v241 = vld [vmem:[%s207 + $0xc0] sm:$0xff]
        %v242 = vld [vmem:[%s207 + $0xc8] sm:$0xff]
        %v243 = vld [vmem:[%s207 + $0xd0] sm:$0xff]
        %v244 = vld [vmem:[%s207 + $0xd8] sm:$0xff]
        %v245 = vld [vmem:[%s207 + $0xe0] sm:$0xff]
        %v246 = vld [vmem:[%s207 + $0xe8] sm:$0xff]
        %v247 = vld [vmem:[%s207 + $0xf0] sm:$0xff]
        %v248 = vld [vmem:[%s207 + $0xf8] sm:$0xff]
        %v249 = vld [vmem:[%s212] sm:$0xff]
        %v250 = vld [vmem:[%s212 + $0x8] sm:$0xff]
        %v251 = vld [vmem:[%s212 + $0x10] sm:$0xff]
        %v252 = vld [vmem:[%s212 + $0x18] sm:$0xff]
        %v253 = vld [vmem:[%s212 + $0x20] sm:$0xff]
        %v254 = vld [vmem:[%s215] sm:$0x1]
        %v256 = vlaneseq
        %v257 = vshrl.u32 %v256, 7
        %v258 = vsub.s32 0, %v257
        %v259 = vrot.slane %v254, %v258
        %vm261 = vcmask 326656
        %v263 = vsel %vm261, %v217, 0
        %v266 = vsel %vm261, %v218, 0
        %v269 = vsel %vm261, %v219, 0
        %v272 = vsel %vm261, %v220, 0
        %v275 = vsel %vm261, %v221, 0
        %v278 = vsel %vm261, %v222, 0
        %v281 = vsel %vm261, %v223, 0
        %v284 = vsel %vm261, %v224, 0
        %v287 = vsel %vm261, %v225, 0
        %v290 = vsel %vm261, %v226, 0
        %v293 = vsel %vm261, %v227, 0
        %v296 = vsel %vm261, %v228, 0
        %v299 = vsel %vm261, %v229, 0
        %v302 = vsel %vm261, %v230, 0
        %v305 = vsel %vm261, %v231, 0
        %v308 = vsel %vm261, %v232, 0
        %v311 = vsel %vm261, %v233, 0
        %v314 = vsel %vm261, %v234, 0
        %v317 = vsel %vm261, %v235, 0
        %v320 = vsel %vm261, %v236, 0
        %v323 = vsel %vm261, %v237, 0
        %v326 = vsel %vm261, %v238, 0
        %v329 = vsel %vm261, %v239, 0
        %v332 = vsel %vm261, %v240, 0
        %v335 = vsel %vm261, %v241, 0
        %v338 = vsel %vm261, %v242, 0
        %v341 = vsel %vm261, %v243, 0
        %v344 = vsel %vm261, %v244, 0
        %v347 = vsel %vm261, %v245, 0
        %v350 = vsel %vm261, %v246, 0
        %v353 = vsel %vm261, %v247, 0
        %v356 = vsel %vm261, %v248, 0
        %358 = vmatprep.subr.mxu0 0.0
        %359 = vmatpush1.msra.mxu0 0.0
        %360 = vmatprep.subr.mxu0 0.0
        %361 = vmatpush1.msra.mxu0 0.0
        %362 = vmatprep.subr.mxu0 0.0
        %363 = vmatpush1.msra.mxu0 0.0
        %364 = vmatprep.subr.mxu0 0.0
        %365 = vmatpush1.msra.mxu0 0.0
        %366 = vmatprep.subr.mxu0 0.0
        %367 = vmatpush1.msra.mxu0 0.0
        %368 = vmatprep.subr.mxu0 0.0
        %369 = vmatpush1.msra.mxu0 0.0
        %370 = vmatprep.subr.mxu0 0.0
        %371 = vmatpush1.msra.mxu0 0.0
        %372 = vmatprep.subr.mxu0 0.0
        %373 = vmatpush1.msra.mxu0 0.0
        %374 = vmatprep.subr.mxu0 0.0
        %375 = vmatpush1.msra.mxu0 0.0
        %376 = vmatprep.subr.mxu0 0.0
        %377 = vmatpush1.msra.mxu0 0.0
        %378 = vmatprep.subr.mxu0 0.0
        %379 = vmatpush1.msra.mxu0 0.0
        %380 = vmatprep.subr.mxu0 0.0
        %381 = vmatpush1.msra.mxu0 %v253
        %382 = vmatprep.subr.mxu0 0.0
        %383 = vmatpush1.msra.mxu0 %v252
        %384 = vmatprep.subr.mxu0 0.0
        %385 = vmatpush1.msra.mxu0 %v251
        %386 = vmatprep.subr.mxu0 0.0
        %387 = vmatpush1.msra.mxu0 %v250
        %388 = vmatprep.subr.mxu0 0.0
        %389 = vmatpush1.msra.mxu0 %v249
        %390 = vmatprep.subr.mxu0 0.0
        %391 = vmatpush2.msra.mxu0 0.0
        %392 = vmatprep.subr.mxu0 0.0
        %393 = vmatpush2.msra.mxu0 0.0
        %394 = vmatprep.subr.mxu0 0.0
        %395 = vmatpush2.msra.mxu0 0.0
        %396 = vmatprep.subr.mxu0 0.0
        %397 = vmatpush2.msra.mxu0 0.0
        %398 = vmatprep.subr.mxu0 0.0
        %399 = vmatpush2.msra.mxu0 0.0
        %400 = vmatprep.subr.mxu0 0.0
        %401 = vmatpush2.msra.mxu0 0.0
        %402 = vmatprep.subr.mxu0 0.0
        %403 = vmatpush2.msra.mxu0 0.0
        %404 = vmatprep.subr.mxu0 0.0
        %405 = vmatpush2.msra.mxu0 0.0
        %406 = vmatprep.subr.mxu0 0.0
        %407 = vmatpush2.msra.mxu0 0.0
        %408 = vmatprep.subr.mxu0 0.0
        %409 = vmatpush2.msra.mxu0 0.0
        %410 = vmatprep.subr.mxu0 0.0
        %411 = vmatpush2.msra.mxu0 0.0
        %412 = vmatprep.subr.mxu0 0.0
        %413 = vmatpush2.msra.mxu0 0.0
        %414 = vmatprep.subr.mxu0 0.0
        %415 = vmatpush2.msra.mxu0 0.0
        %416 = vmatprep.subr.mxu0 0.0
        %417 = vmatpush2.msra.mxu0 0.0
        %418 = vmatprep.subr.mxu0 0.0
        %419 = vmatpush2.msra.mxu0 0.0
        %420 = vmatprep.subr.mxu0 0.0
        %421 = vmatpush2.msra.mxu0 0.0
        %422 = vmatprep.mubr.f32.mxu0 0.0
        %423 = vmatmul.mubr.f32.gmra.mxu0 %v263
        %v424 = vpop.f32.mrf.mxu0
        %v425 = vadd.f32 %v259, %v424
        %v426 = vpop.f32.mrf.mxu0
        %427 = vmatprep.mubr.f32.mxu0 0.0
        %428 = vmatmul.mubr.f32.gmra.mxu0 %v266
        %v429 = vpop.f32.mrf.mxu0
        %v430 = vadd.f32 %v259, %v429
        %v431 = vpop.f32.mrf.mxu0
        %432 = vmatprep.mubr.f32.mxu0 0.0
        %433 = vmatmul.mubr.f32.gmra.mxu0 %v269
        %v434 = vpop.f32.mrf.mxu0
        %v435 = vadd.f32 %v259, %v434
        %v436 = vpop.f32.mrf.mxu0
        %437 = vmatprep.mubr.f32.mxu0 0.0
        %438 = vmatmul.mubr.f32.gmra.mxu0 %v272
        %v439 = vpop.f32.mrf.mxu0
        %v440 = vadd.f32 %v259, %v439
        %v441 = vpop.f32.mrf.mxu0
        %442 = vmatprep.mubr.f32.mxu0 0.0
        %443 = vmatmul.mubr.f32.gmra.mxu0 %v275
        %v444 = vpop.f32.mrf.mxu0
        %v445 = vadd.f32 %v259, %v444
        %v446 = vpop.f32.mrf.mxu0
        %447 = vmatprep.mubr.f32.mxu0 0.0
        %448 = vmatmul.mubr.f32.gmra.mxu0 %v278
        %v449 = vpop.f32.mrf.mxu0
        %v450 = vadd.f32 %v259, %v449
        %v451 = vpop.f32.mrf.mxu0
        %452 = vmatprep.mubr.f32.mxu0 0.0
        %453 = vmatmul.mubr.f32.gmra.mxu0 %v281
        %v454 = vpop.f32.mrf.mxu0
        %v455 = vadd.f32 %v259, %v454
        %v456 = vpop.f32.mrf.mxu0
        %457 = vmatprep.mubr.f32.mxu0 0.0
        %458 = vmatmul.mubr.f32.gmra.mxu0 %v284
        %v459 = vpop.f32.mrf.mxu0
        %v460 = vadd.f32 %v259, %v459
        %v461 = vpop.f32.mrf.mxu0
        %462 = vmatprep.mubr.f32.mxu0 0.0
        %463 = vmatmul.mubr.f32.gmra.mxu0 %v287
        %v464 = vpop.f32.mrf.mxu0
        %v465 = vadd.f32 %v259, %v464
        %v466 = vpop.f32.mrf.mxu0
        %467 = vmatprep.mubr.f32.mxu0 0.0
        %468 = vmatmul.mubr.f32.gmra.mxu0 %v290
        %v469 = vpop.f32.mrf.mxu0
        %v470 = vadd.f32 %v259, %v469
        %v471 = vpop.f32.mrf.mxu0
        %472 = vmatprep.mubr.f32.mxu0 0.0
        %473 = vmatmul.mubr.f32.gmra.mxu0 %v293
        %v474 = vpop.f32.mrf.mxu0
        %v475 = vadd.f32 %v259, %v474
        %v476 = vpop.f32.mrf.mxu0
        %477 = vmatprep.mubr.f32.mxu0 0.0
        %478 = vmatmul.mubr.f32.gmra.mxu0 %v296
        %v479 = vpop.f32.mrf.mxu0
        %v480 = vadd.f32 %v259, %v479
        %v481 = vpop.f32.mrf.mxu0
        %482 = vmatprep.mubr.f32.mxu0 0.0
        %483 = vmatmul.mubr.f32.gmra.mxu0 %v299
        %v484 = vpop.f32.mrf.mxu0
        %v485 = vadd.f32 %v259, %v484
        %v486 = vpop.f32.mrf.mxu0
        %487 = vmatprep.mubr.f32.mxu0 0.0
        %488 = vmatmul.mubr.f32.gmra.mxu0 %v302
        %v489 = vpop.f32.mrf.mxu0
        %v490 = vadd.f32 %v259, %v489
        %v491 = vpop.f32.mrf.mxu0
        %492 = vmatprep.mubr.f32.mxu0 0.0
        %493 = vmatmul.mubr.f32.gmra.mxu0 %v305
        %v494 = vpop.f32.mrf.mxu0
        %v495 = vadd.f32 %v259, %v494
        %v496 = vpop.f32.mrf.mxu0
        %497 = vmatprep.mubr.f32.mxu0 0.0
        %498 = vmatmul.mubr.f32.gmra.mxu0 %v308
        %v499 = vpop.f32.mrf.mxu0
        %v500 = vadd.f32 %v259, %v499
        %v501 = vpop.f32.mrf.mxu0
        %502 = vmatprep.mubr.f32.mxu0 0.0
        %503 = vmatmul.mubr.f32.gmra.mxu0 %v311
        %v504 = vpop.f32.mrf.mxu0
        %v505 = vadd.f32 %v259, %v504
        %v506 = vpop.f32.mrf.mxu0
        %507 = vmatprep.mubr.f32.mxu0 0.0
        %508 = vmatmul.mubr.f32.gmra.mxu0 %v314
        %v509 = vpop.f32.mrf.mxu0
        %v510 = vadd.f32 %v259, %v509
        %v511 = vpop.f32.mrf.mxu0
        %512 = vmatprep.mubr.f32.mxu0 0.0
        %513 = vmatmul.mubr.f32.gmra.mxu0 %v317
        %v514 = vpop.f32.mrf.mxu0
        %v515 = vadd.f32 %v259, %v514
        %v516 = vpop.f32.mrf.mxu0
        %517 = vmatprep.mubr.f32.mxu0 0.0
        %518 = vmatmul.mubr.f32.gmra.mxu0 %v320
        %v519 = vpop.f32.mrf.mxu0
        %v520 = vadd.f32 %v259, %v519
        %v521 = vpop.f32.mrf.mxu0
        %522 = vmatprep.mubr.f32.mxu0 0.0
        %523 = vmatmul.mubr.f32.gmra.mxu0 %v323
        %v524 = vpop.f32.mrf.mxu0
        %v525 = vadd.f32 %v259, %v524
        %v526 = vpop.f32.mrf.mxu0
        %527 = vmatprep.mubr.f32.mxu0 0.0
        %528 = vmatmul.mubr.f32.gmra.mxu0 %v326
        %v529 = vpop.f32.mrf.mxu0
        %v530 = vadd.f32 %v259, %v529
        %v531 = vpop.f32.mrf.mxu0
        %532 = vmatprep.mubr.f32.mxu0 0.0
        %533 = vmatmul.mubr.f32.gmra.mxu0 %v329
        %v534 = vpop.f32.mrf.mxu0
        %v535 = vadd.f32 %v259, %v534
        %v536 = vpop.f32.mrf.mxu0
        %537 = vmatprep.mubr.f32.mxu0 0.0
        %538 = vmatmul.mubr.f32.gmra.mxu0 %v332
        %v539 = vpop.f32.mrf.mxu0
        %v540 = vadd.f32 %v259, %v539
        %v541 = vpop.f32.mrf.mxu0
        %542 = vmatprep.mubr.f32.mxu0 0.0
        %543 = vmatmul.mubr.f32.gmra.mxu0 %v335
        %v544 = vpop.f32.mrf.mxu0
        %v545 = vadd.f32 %v259, %v544
        %v546 = vpop.f32.mrf.mxu0
        %547 = vmatprep.mubr.f32.mxu0 0.0
        %548 = vmatmul.mubr.f32.gmra.mxu0 %v338
        %v549 = vpop.f32.mrf.mxu0
        %v550 = vadd.f32 %v259, %v549
        %v551 = vpop.f32.mrf.mxu0
        %552 = vmatprep.mubr.f32.mxu0 0.0
        %553 = vmatmul.mubr.f32.gmra.mxu0 %v341
        %v554 = vpop.f32.mrf.mxu0
        %v555 = vadd.f32 %v259, %v554
        %v556 = vpop.f32.mrf.mxu0
        %557 = vmatprep.mubr.f32.mxu0 0.0
        %558 = vmatmul.mubr.f32.gmra.mxu0 %v344
        %v559 = vpop.f32.mrf.mxu0
        %v560 = vadd.f32 %v259, %v559
        %v561 = vpop.f32.mrf.mxu0
        %562 = vmatprep.mubr.f32.mxu0 0.0
        %563 = vmatmul.mubr.f32.gmra.mxu0 %v347
        %v564 = vpop.f32.mrf.mxu0
        %v565 = vadd.f32 %v259, %v564
        %v566 = vpop.f32.mrf.mxu0
        %567 = vmatprep.mubr.f32.mxu0 0.0
        %568 = vmatmul.mubr.f32.gmra.mxu0 %v350
        %v569 = vpop.f32.mrf.mxu0
        %v570 = vadd.f32 %v259, %v569
        %v571 = vpop.f32.mrf.mxu0
        %572 = vmatprep.mubr.f32.mxu0 0.0
        %573 = vmatmul.mubr.f32.gmra.mxu0 %v353
        %v574 = vpop.f32.mrf.mxu0
        %v575 = vadd.f32 %v259, %v574
        %v576 = vpop.f32.mrf.mxu0
        %577 = vmatprep.mubr.f32.mxu0 0.0
        %578 = vmatmul.mubr.f32.gmra.mxu0 %v356
        %v579 = vpop.f32.mrf.mxu0
        %v580 = vadd.f32 %v259, %v579
        %v581 = vpop.f32.mrf.mxu0
        %582 = vdwg.mxu0
        %v583 = vmax.f32 %v425, 0.0
        %v584 = vmax.f32 %v430, 0.0
        %v585 = vmax.f32 %v435, 0.0
        %v586 = vmax.f32 %v440, 0.0
        %v587 = vmax.f32 %v445, 0.0
        %v588 = vmax.f32 %v450, 0.0
        %v589 = vmax.f32 %v455, 0.0
        %v590 = vmax.f32 %v460, 0.0
        %v591 = vmax.f32 %v465, 0.0
        %v592 = vmax.f32 %v470, 0.0
        %v593 = vmax.f32 %v475, 0.0
        %v594 = vmax.f32 %v480, 0.0
        %v595 = vmax.f32 %v485, 0.0
        %v596 = vmax.f32 %v490, 0.0
        %v597 = vmax.f32 %v495, 0.0
        %v598 = vmax.f32 %v500, 0.0
        %v599 = vmax.f32 %v505, 0.0
        %v600 = vmax.f32 %v510, 0.0
        %v601 = vmax.f32 %v515, 0.0
        %v602 = vmax.f32 %v520, 0.0
        %v603 = vmax.f32 %v525, 0.0
        %v604 = vmax.f32 %v530, 0.0
        %v605 = vmax.f32 %v535, 0.0
        %v606 = vmax.f32 %v540, 0.0
        %v607 = vmax.f32 %v545, 0.0
        %v608 = vmax.f32 %v550, 0.0
        %v609 = vmax.f32 %v555, 0.0
        %v610 = vmax.f32 %v560, 0.0
        %v611 = vmax.f32 %v565, 0.0
        %v612 = vmax.f32 %v570, 0.0
        %v613 = vmax.f32 %v575, 0.0
        %v614 = vmax.f32 %v580, 0.0
        %615 = vst [vmem:[%s202] sm:$0xff] %v583
        %616 = vst [vmem:[%s202 + $0x8] sm:$0xff] %v584
        %617 = vst [vmem:[%s202 + $0x10] sm:$0xff] %v585
        %618 = vst [vmem:[%s202 + $0x18] sm:$0xff] %v586
        %619 = vst [vmem:[%s202 + $0x20] sm:$0xff] %v587
        %620 = vst [vmem:[%s202 + $0x28] sm:$0xff] %v588
        %621 = vst [vmem:[%s202 + $0x30] sm:$0xff] %v589
        %622 = vst [vmem:[%s202 + $0x38] sm:$0xff] %v590
        %623 = vst [vmem:[%s202 + $0x40] sm:$0xff] %v591
        %624 = vst [vmem:[%s202 + $0x48] sm:$0xff] %v592
        %625 = vst [vmem:[%s202 + $0x50] sm:$0xff] %v593
        %626 = vst [vmem:[%s202 + $0x58] sm:$0xff] %v594
        %627 = vst [vmem:[%s202 + $0x60] sm:$0xff] %v595
        %628 = vst [vmem:[%s202 + $0x68] sm:$0xff] %v596
        %629 = vst [vmem:[%s202 + $0x70] sm:$0xff] %v597
        %630 = vst [vmem:[%s202 + $0x78] sm:$0xff] %v598
        %631 = vst [vmem:[%s202 + $0x80] sm:$0xff] %v599
        %632 = vst [vmem:[%s202 + $0x88] sm:$0xff] %v600
        %633 = vst [vmem:[%s202 + $0x90] sm:$0xff] %v601
        %634 = vst [vmem:[%s202 + $0x98] sm:$0xff] %v602
        %635 = vst [vmem:[%s202 + $0xa0] sm:$0xff] %v603
        %636 = vst [vmem:[%s202 + $0xa8] sm:$0xff] %v604
        %637 = vst [vmem:[%s202 + $0xb0] sm:$0xff] %v605
        %638 = vst [vmem:[%s202 + $0xb8] sm:$0xff] %v606
        %639 = vst [vmem:[%s202 + $0xc0] sm:$0xff] %v607
        %640 = vst [vmem:[%s202 + $0xc8] sm:$0xff] %v608
        %641 = vst [vmem:[%s202 + $0xd0] sm:$0xff] %v609
        %642 = vst [vmem:[%s202 + $0xd8] sm:$0xff] %v610
        %643 = vst [vmem:[%s202 + $0xe0] sm:$0xff] %v611
        %644 = vst [vmem:[%s202 + $0xe8] sm:$0xff] %v612
        %645 = vst [vmem:[%s202 + $0xf0] sm:$0xff] %v613
        %646 = vst [vmem:[%s202 + $0xf8] sm:$0xff] %v614
        %s647 = sand.u32 %s117, 1
        %s648 = scalar_lea.sflag [#allocation3], %s647
        %s649 = sand.u32 %s117, 1
        %s650 = smul.addr %s649, 256
        %s651 = scalar_lea.vmem [#allocation2], %s650
        // Predicated region
        $region33: #{tpu_custom_call.1} parent=31 // pred_check
          %p652 = pneg %p127
        $region34: #{tpu_custom_call.1} parent=31 // pred_check_branch
          %654 = sbr.rel (%p652) target = $region36
        $region35: #{tpu_custom_call.1} parent=31 // pred_region
          %s655 = smul.u32 32, %s21
          %s657 = ssub.s32 4096, 4096
          %658 = vsyncadd %s648, %s657
          %s659 = sadd.s32 %s22, %s655
          %s660 = smul.addr %s659, 128
          %s661 = scalar_lea.hbm %s3, %s660
          %s662 = sshll.u32 %s651, 4
          %s663 = int_to_ptr.vmem [resolvable:$true] %s662
          %668 = dma.vmem_to_hbm [thread:$0]  %s663, 4096, %s661, %s648, 128, 128, 8
        $region36: #{tpu_custom_call.1} parent=31 // pred_fallthru
          _
      $region32: #{tpu_custom_call.1} parent=5 // pred_fallthru
        _
      %p669 = scmp.le.s32.totalorder 2, %s12
      // Predicated region
      $region37: #{tpu_custom_call.1} parent=5 // pred_check
        %p670 = pneg %p669
      $region38: #{tpu_custom_call.1} parent=5 // pred_check_branch
        %672 = sbr.rel (%p670) target = $region40
      $region39: #{tpu_custom_call.1} parent=5 // pred_region
        %s673 = ssub.s32 %s12, 2
        // Predicated region
        $region41: #{tpu_custom_call.1} parent=39 // pred_check
          %p674 = pneg %p133
        $region42: #{tpu_custom_call.1} parent=39 // pred_check_branch
          %676 = sbr.rel (%p674) target = $region44
        $region43: #{tpu_custom_call.1} parent=39 // pred_region
          %s677 = sand.u32 %s118, 1
          %s678 = scalar_lea.sflag [#allocation3], %s677
          %s679 = sand.u32 %s118, 1
          %s680 = smul.addr %s679, 256
          %s681 = scalar_lea.vmem [#allocation2], %s680
          %682 = dma.done %s678, 4096
        $region44: #{tpu_custom_call.1} parent=39 // pred_fallthru
          _
      $region40: #{tpu_custom_call.1} parent=5 // pred_fallthru
        _
    $region6: #{tpu_custom_call.1} parent=1 // loop_footer
      %s16 = sadd.s32 1, %s12
    $region7: #{tpu_custom_call.1} parent=1 // loop_footer_branch
      %11 = sbr.rel target = $region3
    $region8: #{tpu_custom_call.1} parent=1 // loop_exit
      _
    %683 = vsyncpa [#allocation3], 1
    %s684 = scalar_lea.sflag [#allocation3], 1
    %685 = vsyncpa %s684, 1

</llo_original>
